<compile_context>
chip_gen: v6e
topology: v6e:2x2x1
jax: 0.10.0
libtpu: 0.0.40
codegen_flags: <defaults>
</compile_context>

<pallas_src>
import math

import jax
import jax.numpy as jnp
from jax.experimental import pallas as pl
from jax.experimental.pallas import tpu as pltpu


# ------------------------------- small utils -------------------------------

def _round_up(n, m):
    return ((n + m - 1) // m) * m


def _lane(n):  # last-dim lane padding used only for VMEM budgeting
    return _round_up(n, 128)


# ----------------------------- kernel helpers ------------------------------

def _pairwise_sqdist(x, ct):
    """x: (TB, D) f32, ct: (D, C) f32 (pre-transposed) -> (TB, C) squared dist."""
    x_sq = jnp.sum(x * x, axis=-1, keepdims=True)                 # (TB, 1)
    c_sq = jnp.sum(ct * ct, axis=0, keepdims=True)                # (1, C)
    xc = jnp.dot(x, ct, preferred_element_type=jnp.float32)       # (TB, C) MXU
    return jnp.maximum(x_sq + c_sq - 2.0 * xc, 0.0)


def _pairwise_dist(x, ct):
    return jnp.sqrt(_pairwise_sqdist(x, ct))


def _legendre_into_basis(t, order, C, basis_ref):
    """Legendre recurrence; stores P_1..P_order into basis_ref columns.

    basis_ref: (TB, K_pad) VMEM scratch, K_pad = round_up(order*C, 128).
    Pad columns are zeroed on every call (trivially cheap) so the matmul
    against the zero-padded weight rows can never pick up NaN garbage, even
    when the grid is megacore-split and this core never ran grid index 0.
    """
    K = order * C
    K_pad = basis_ref.shape[-1]
    if K_pad > K:
        basis_ref[:, pl.ds(K, K_pad - K)] = jnp.zeros(
            (t.shape[0], K_pad - K), dtype=basis_ref.dtype)
    p_prev = jnp.ones_like(t)            # P_0 (its matmul term is the bias)
    p_cur = t                            # P_1
    basis_ref[:, pl.ds(0, C)] = p_cur
    for n in range(1, order):
        a_n = (2.0 * n + 1.0) / (n + 1.0)   # trace-time constants
        b_n = float(n) / (n + 1.0)
        p_next = a_n * t * p_cur - b_n * p_prev
        p_prev, p_cur = p_cur, p_next
        basis_ref[:, pl.ds(n * C, C)] = p_cur


def _emit_output(d, d_min, d_max, order, C, basis_ref, w_ref, bias_ref, o_ref):
    """Normalize, run the recurrence into VMEM scratch, ONE fused MXU matmul."""
    inv = 2.0 / (d_max - d_min)          # single divide; wide multiply below
    t = (d - d_min) * inv - 1.0
    _legendre_into_basis(t, order, C, basis_ref)
    acc = jnp.dot(basis_ref[...], w_ref[...], preferred_element_type=jnp.float32)
    o_ref[...] = (acc + bias_ref[...]).astype(o_ref.dtype)


# -------------------------------- kernels ----------------------------------

def _make_fused_kernel(order, C):
    """Single-call, two-phase kernel: x read once, d cached in VMEM scratch."""
    def kernel(x_ref, ct_ref, w_ref, bias_ref, o_ref,
               d_ref, mn_ref, mx_ref, basis_ref):
        p = pl.program_id(0)     # 0: distance + global min/max, 1: output
        i = pl.program_id(1)     # batch tile

        @pl.when(jnp.logical_and(p == 0, i == 0))
        def _():
            mn_ref[...] = jnp.full_like(mn_ref, jnp.inf)
            mx_ref[...] = jnp.full_like(mx_ref, -jnp.inf)

        @pl.when(p == 0)
        def _():
            x = x_ref[...].astype(jnp.float32)
            ct = ct_ref[...].astype(jnp.float32)
            d = _pairwise_dist(x, ct)
            d_ref[i] = d                                   # cache: x read once
            mn_ref[...] = jnp.minimum(mn_ref[...], jnp.min(d))
            mx_ref[...] = jnp.maximum(mx_ref[...], jnp.max(d))

        @pl.when(p == 1)
        def _():
            _emit_output(d_ref[i], mn_ref[...], mx_ref[...], order, C,
                         basis_ref, w_ref, bias_ref, o_ref)

    return kernel


def _partial_minmax_kernel(x_ref, ct_ref, mn_ref, mx_ref):
    """Fallback pass 1: per-tile partial min/max of the SQUARED distances."""
    x = x_ref[...].astype(jnp.float32)
    ct = ct_ref[...].astype(jnp.float32)
    d2 = _pairwise_sqdist(x, ct)          # sqrt is monotone -> skipped here
    mn_ref[...] = jnp.zeros_like(mn_ref) + jnp.min(d2)
    mx_ref[...] = jnp.zeros_like(mx_ref) + jnp.max(d2)


def _make_tiled_kernel(order, C):
    """Fallback pass 2: batch-parallel tiles with global min/max SMEM scalars."""
    def kernel(mm_ref, x_ref, ct_ref, w_ref, bias_ref, o_ref, basis_ref):
        d_min = mm_ref[0]                 # SMEM scalars (global over all tiles)
        d_max = mm_ref[1]
        x = x_ref[...].astype(jnp.float32)
        ct = ct_ref[...].astype(jnp.float32)
        d = _pairwise_dist(x, ct)
        _emit_output(d, d_min, d_max, order, C, basis_ref, w_ref, bias_ref, o_ref)
    return kernel


# -------------------------------- wrapper ----------------------------------

def _pick_block_b(B, cap=1024):
    if B <= cap:
        return max(8, _round_up(B, 8))
    return cap


def _fused_vmem_bytes(block_b, num_tiles, C, D, F, K_pad):
    by = 0
    by += num_tiles * block_b * _lane(C) * 4          # cached distances
    by += 2 * block_b * _lane(D) * 4                  # x double buffer
    by += 2 * block_b * _lane(F) * 4                  # out double buffer
    by += block_b * K_pad * 4                         # basis scratch
    by += 2 * _round_up(D, 8) * _lane(C) * 4          # centers
    by += 2 * K_pad * _lane(F) * 4                    # weights
    by += 2 * 8 * _lane(F) * 4                        # bias
    by += 4 * 8 * 128 * 4                             # min/max scratch + slack
    return by


def _cost_main(B, C, D, F, K_pad, order):
    flops = 2 * B * C * D + 2 * B * K_pad * F + 8 * B * C * order
    bytes_accessed = 4 * (B * D + D * C + K_pad * F + F + B * F)
    return pl.CostEstimate(flops=flops, transcendentals=B * C,
                           bytes_accessed=bytes_accessed)


def _cost_minmax(B, C, D, num_tiles):
    return pl.CostEstimate(flops=2 * B * C * D + 2 * B * C,
                           transcendentals=0,
                           bytes_accessed=4 * (B * D + D * C
                                               + num_tiles * 2 * 8 * 128))


def legendre_kan_forward(x, centers, weights, order, *, block_b=None,
                         force_two_pass=False):
    """x: (B, D), centers: (C, D), weights: (C, order+1, F) -> (B, F)."""
    B, D = x.shape
    C = centers.shape[0]
    F = weights.shape[-1]

    x = x.astype(jnp.float32)
    # Wrapper-side layout plumbing (kept out of the kernel):
    centers_t = jnp.transpose(centers.astype(jnp.float32))            # (D, C)
    # P_0 == 1  =>  its matmul contribution is an input-independent bias.
    bias = jnp.sum(weights[:, 0, :].astype(jnp.float32), axis=0,
                   keepdims=True)                                      # (1, F)

    if order == 0:
        # Degenerate: output is the P_0 bias for every row.
        return jnp.broadcast_to(bias, (B, F))

    # Weights for P_1..P_order flattened (order-major, center-minor) and
    # zero-padded to a lane-aligned K: the in-kernel basis scratch then feeds
    # the MXU with a full 128-wide K and zero rows contribute nothing.
    K = order * C
    K_pad = _round_up(K, 128)
    w_flat = jnp.transpose(weights[:, 1:, :].astype(jnp.float32),
                           (1, 0, 2)).reshape(K, F)
    w_flat = jnp.pad(w_flat, ((0, K_pad - K), (0, 0)))                 # (K_pad, F)

    if block_b is None:
        block_b = _pick_block_b(B)
    block_b = _round_up(min(block_b, max(B, 1)), 8)
    num_tiles = (B + block_b - 1) // block_b
    B_pad = num_tiles * block_b
    if B_pad != B:
        # Pad by repeating row 0: duplicate rows give duplicate distances, so
        # the GLOBAL min/max (hence every t) is unchanged; padded output rows
        # are sliced off below.
        x_pad = jnp.concatenate(
            [x, jnp.broadcast_to(x[:1], (B_pad - B, D))], axis=0)
    else:
        x_pad = x

    use_fused = (not force_two_pass) and (
        _fused_vmem_bytes(block_b, num_tiles, C, D, F, K_pad) <= (40 << 20))

    if use_fused:
        # ---------------- single-call fused path (d cached) ----------------
        out = pl.pallas_call(
            _make_fused_kernel(order, C),
            out_shape=jax.ShapeDtypeStruct((B_pad, F), jnp.float32),
            grid_spec=pltpu.PrefetchScalarGridSpec(
                num_scalar_prefetch=0,
                grid=(2, num_tiles),
                in_specs=[
                    # Phase 0 walks the x tiles; phase 1 parks on the last
                    # tile already resident -> x is DMA'd from HBM once.
                    pl.BlockSpec(
                        (block_b, D),
                        lambda p, i: (i * (1 - p) + (num_tiles - 1) * p, 0)),
                    pl.BlockSpec((D, C), lambda p, i: (0, 0)),
                    pl.BlockSpec((K_pad, F), lambda p, i: (0, 0)),
                    pl.BlockSpec((1, F), lambda p, i: (0, 0)),
                ],
                # Phase 0 parks on output block 0 (never written -> never
                # flushed); phase 1 visits each block exactly once.
                out_specs=pl.BlockSpec((block_b, F), lambda p, i: (i * p, 0)),
                scratch_shapes=[
                    pltpu.VMEM((num_tiles, block_b, C), jnp.float32),  # d cache
                    pltpu.VMEM((1, 1), jnp.float32),                   # global min
                    pltpu.VMEM((1, 1), jnp.float32),                   # global max
                    pltpu.VMEM((block_b, K_pad), jnp.float32),         # basis
                ],
            ),
            compiler_params=pltpu.CompilerParams(
                dimension_semantics=("arbitrary", "arbitrary"),
                vmem_limit_bytes=48 << 20),
            cost_estimate=_cost_main(B_pad, C, D, F, K_pad, order),
        )(x_pad, centers_t, w_flat, bias)
        return out[:B]

    # ------------- fallback two-pass path (d cache too big) ----------------
    # Pass 1: per-tile partial min/max of squared distances ("parallel" so a
    # v7x megacore can split the HBM stream); reduced + sqrt'ed in the wrapper.
    mn, mx = pl.pallas_call(
        _partial_minmax_kernel,
        out_shape=(jax.ShapeDtypeStruct((num_tiles, 8, 128), jnp.float32),
                   jax.ShapeDtypeStruct((num_tiles, 8, 128), jnp.float32)),
        grid_spec=pltpu.PrefetchScalarGridSpec(
            num_scalar_prefetch=0,
            grid=(num_tiles,),
            in_specs=[
                pl.BlockSpec((block_b, D), lambda i: (i, 0)),
                pl.BlockSpec((D, C), lambda i: (0, 0)),
            ],
            out_specs=(pl.BlockSpec((1, 8, 128), lambda i: (i, 0, 0)),
                       pl.BlockSpec((1, 8, 128), lambda i: (i, 0, 0))),
        ),
        compiler_params=pltpu.CompilerParams(
            dimension_semantics=("parallel",)),
        cost_estimate=_cost_minmax(B_pad, C, D, num_tiles),
    )(x_pad, centers_t)
    d_min = jnp.sqrt(jnp.min(mn))
    d_max = jnp.sqrt(jnp.max(mx))
    dminmax = jnp.stack([d_min, d_max]).astype(jnp.float32)            # (2,)

    # Pass 2: batch-parallel tiles; global min/max fed as SMEM scalars so the
    # normalization matches the untiled semantics exactly.
    # TODO(synk): when 2*C < D this pass could read a d cache written by pass 1
    # instead of re-reading x; byte-neutral at the demo shapes (C=16, D=32).
    out = pl.pallas_call(
        _make_tiled_kernel(order, C),
        out_shape=jax.ShapeDtypeStruct((B_pad, F), jnp.float32),
        grid_spec=pltpu.PrefetchScalarGridSpec(
            num_scalar_prefetch=0,
            grid=(num_tiles,),
            in_specs=[
                pl.BlockSpec(memory_space=pltpu.MemorySpace.SMEM),     # [d_min, d_max]
                pl.BlockSpec((block_b, D), lambda i: (i, 0)),
                pl.BlockSpec((D, C), lambda i: (0, 0)),
                pl.BlockSpec((K_pad, F), lambda i: (0, 0)),
                pl.BlockSpec((1, F), lambda i: (0, 0)),
            ],
            out_specs=pl.BlockSpec((block_b, F), lambda i: (i, 0)),
            scratch_shapes=[pltpu.VMEM((block_b, K_pad), jnp.float32)],
        ),
        compiler_params=pltpu.CompilerParams(
            dimension_semantics=("parallel",)),
        cost_estimate=_cost_main(B_pad, C, D, F, K_pad, order),
    )(dminmax, x_pad, centers_t, w_flat, bias)
    return out[:B]


# ----------------------------- reference & test ----------------------------

def _xavier_uniform(key, shape, fan_in, fan_out, dtype=jnp.float32):
    bound = math.sqrt(6.0 / (fan_in + fan_out))
    return jax.random.uniform(key, shape, dtype=dtype, minval=-bound, maxval=bound)


def _reference(x, centers, weights, order):
    """Pure-JAX reference matching the PyTorch forward."""
    d = jnp.sqrt(jnp.maximum(
        jnp.sum((x[:, None, :] - centers[None, :, :]) ** 2, axis=-1), 0.0))
    t = 2.0 * (d - jnp.min(d)) / (jnp.max(d) - jnp.min(d)) - 1.0
    polys = [jnp.ones_like(t), t]
    for n in range(1, order):
        polys.append(((2.0 * n + 1.0) * t * polys[n] - n * polys[n - 1]) / (n + 1.0))
    basis = jnp.stack(polys[: order + 1], axis=-1)                     # (B, C, N+1)
    weighted = jnp.einsum('bcn,cnf->bcf', basis, weights)
    return jnp.sum(weighted, axis=1)


if __name__ == "__main__":
    input_dim = 32
    output_dim = 32
    num_centers = 16
    order = 5

    key = jax.random.PRNGKey(0)
    kc, kw, k1, k2, k3 = jax.random.split(key, 5)

    centers = _xavier_uniform(kc, (num_centers, input_dim),
                              fan_in=input_dim, fan_out=num_centers)
    weights = _xavier_uniform(kw, (num_centers, order + 1, output_dim),
                              fan_in=(order + 1) * output_dim,
                              fan_out=num_centers * output_dim)

    # 1) Small batch -> fused path, single tile.
    x1 = jax.random.normal(k1, (8, input_dim), dtype=jnp.float32)
    o1 = jax.block_until_ready(legendre_kan_forward(x1, centers, weights, order))
    r1 = _reference(x1, centers, weights, order)
    assert o1.shape == (8, output_dim)
    assert jnp.allclose(o1, r1, atol=1e-4, rtol=1e-4), (
        f"fused single-tile max abs err {float(jnp.max(jnp.abs(o1 - r1)))}")

    # 2) Larger batch with small tiles -> fused path, multi-tile d cache.
    x2 = jax.random.normal(k2, (64, input_dim), dtype=jnp.float32)
    o2 = jax.block_until_ready(
        legendre_kan_forward(x2, centers, weights, order, block_b=16))
    r2 = _reference(x2, centers, weights, order)
    assert o2.shape == (64, output_dim)
    assert jnp.allclose(o2, r2, atol=1e-4, rtol=1e-4), (
        f"fused multi-tile max abs err {float(jnp.max(jnp.abs(o2 - r2)))}")

    # 3) Batch not divisible by the tile -> pad-with-row-0 path.
    x3 = jax.random.normal(k3, (40, input_dim), dtype=jnp.float32)
    o3 = jax.block_until_ready(
        legendre_kan_forward(x3, centers, weights, order, block_b=16))
    r3 = _reference(x3, centers, weights, order)
    assert o3.shape == (40, output_dim)
    assert jnp.allclose(o3, r3, atol=1e-4, rtol=1e-4), (
        f"padded-batch max abs err {float(jnp.max(jnp.abs(o3 - r3)))}")

    # 4) Force the two-pass fallback (parallel partial min/max + tiled main)
    #    so that code path is also exercised on TPU.
    o4 = jax.block_until_ready(
        legendre_kan_forward(x2, centers, weights, order, block_b=16,
                             force_two_pass=True))
    assert jnp.allclose(o4, r2, atol=1e-4, rtol=1e-4), (
        f"two-pass fallback max abs err {float(jnp.max(jnp.abs(o4 - r2)))}")

    print("KERNEL_OK")
</pallas_src>

<mosaic_0001>
module attributes {stable_mosaic.version = 11 : i64} {
  func.func @kernel(%arg0: i32, %arg1: i32, %arg2: memref<8x32xf32, #tpu.memory_space<vmem>>, %arg3: memref<32x16xf32, #tpu.memory_space<vmem>>, %arg4: memref<128x32xf32, #tpu.memory_space<vmem>>, %arg5: memref<1x32xf32, #tpu.memory_space<vmem>>, %arg6: memref<8x32xf32, #tpu.memory_space<vmem>>, %arg7: memref<1x8x16xf32, #tpu.memory_space<vmem>>, %arg8: memref<1x1xf32, #tpu.memory_space<vmem>>, %arg9: memref<1x1xf32, #tpu.memory_space<vmem>>, %arg10: memref<8x128xf32, #tpu.memory_space<vmem>>) attributes {dimension_semantics = [#tpu.dimension_semantics<arbitrary>, #tpu.dimension_semantics<arbitrary>], iteration_bounds = array<i64: 2, 1>, scalar_prefetch = 0 : i64, scratch_operands = 4 : i64, tpu.core_type = #tpu.core_type<tc>, window_params = [{transform_indices = @transform_0, window_bounds = array<i64: 8, 32>}, {pipeline_mode = #tpu.pipeline_mode<synchronous>, transform_indices = @transform_1, window_bounds = array<i64: 32, 16>}, {pipeline_mode = #tpu.pipeline_mode<synchronous>, transform_indices = @transform_2, window_bounds = array<i64: 128, 32>}, {pipeline_mode = #tpu.pipeline_mode<synchronous>, transform_indices = @transform_3, window_bounds = array<i64: 1, 32>}, {transform_indices = @transform_4, window_bounds = array<i64: 8, 32>}]} {
    %c0_i32 = arith.constant 0 : i32
    %0 = arith.cmpi eq, %arg0, %c0_i32 : i32
    %c0_i32_0 = arith.constant 0 : i32
    %1 = arith.cmpi eq, %arg1, %c0_i32_0 : i32
    %2 = arith.andi %0, %1 : i1
    %3 = arith.extui %2 : i1 to i32
    %c0_i32_1 = arith.constant 0 : i32
    %4 = arith.cmpi ne, %3, %c0_i32_1 : i32
    scf.if %4 {
      %cst = arith.constant 0x7F800000 : f32
      %11 = vector.broadcast %cst : f32 to vector<1x1xf32>
      %c0 = arith.constant 0 : index
      %c0_5 = arith.constant 0 : index
      %12 = vector.load %arg8[%c0, %c0_5] : memref<1x1xf32, #tpu.memory_space<vmem>>, vector<1x1xf32>
      tpu.vector_store %arg8[%c0, %c0_5], %11 {strides = array<i32>} : memref<1x1xf32, #tpu.memory_space<vmem>>, vector<1x1xf32>,
      %cst_6 = arith.constant 0xFF800000 : f32
      %13 = vector.broadcast %cst_6 : f32 to vector<1x1xf32>
      %c0_7 = arith.constant 0 : index
      %c0_8 = arith.constant 0 : index
      %14 = vector.load %arg9[%c0_7, %c0_8] : memref<1x1xf32, #tpu.memory_space<vmem>>, vector<1x1xf32>
      tpu.vector_store %arg9[%c0_7, %c0_8], %13 {strides = array<i32>} : memref<1x1xf32, #tpu.memory_space<vmem>>, vector<1x1xf32>,
    } else {
    }
    %c0_i32_2 = arith.constant 0 : i32
    %5 = arith.cmpi eq, %arg0, %c0_i32_2 : i32
    %6 = arith.extui %5 : i1 to i32
    %c0_i32_3 = arith.constant 0 : i32
    %7 = arith.cmpi ne, %6, %c0_i32_3 : i32
    scf.if %7 {
      %c0 = arith.constant 0 : index
      %c0_5 = arith.constant 0 : index
      %11 = vector.load %arg2[%c0, %c0_5] : memref<8x32xf32, #tpu.memory_space<vmem>>, vector<8x32xf32>
      %c0_6 = arith.constant 0 : index
      %c0_7 = arith.constant 0 : index
      %12 = vector.load %arg3[%c0_6, %c0_7] : memref<32x16xf32, #tpu.memory_space<vmem>>, vector<32x16xf32>
      %13 = arith.mulf %11, %11 : vector<8x32xf32>
      %cst = arith.constant dense<0.000000e+00> : vector<8xf32>
      %14 = vector.multi_reduction <add>, %13, %cst [1] : vector<8x32xf32> to vector<8xf32>
      %15 = vector.shape_cast %14 : vector<8xf32> to vector<8x1xf32>
      %16 = arith.mulf %12, %12 : vector<32x16xf32>
      %cst_8 = arith.constant dense<0.000000e+00> : vector<16xf32>
      %17 = vector.multi_reduction <add>, %16, %cst_8 [0] : vector<32x16xf32> to vector<16xf32>
      %18 = vector.shape_cast %17 : vector<16xf32> to vector<1x16xf32>
      %cst_9 = arith.constant dense<0.000000e+00> : vector<8x16xf32>
      %19 = tpu.matmul %11, %12, %cst_9 {dimension_numbers = #tpu.dot_dimension_numbers<[1], [0], [0], [1], [0, 0, 1, 1], [], []>} : vector<8x32xf32>, vector<32x16xf32>, vector<8x16xf32> -> vector<8x16xf32>
      %20 = vector.broadcast %15 : vector<8x1xf32> to vector<8x16xf32>
      %21 = vector.broadcast %18 : vector<1x16xf32> to vector<8x16xf32>
      %22 = arith.addf %20, %21 : vector<8x16xf32>
      %cst_10 = arith.constant 2.000000e+00 : f32
      %23 = vector.broadcast %cst_10 : f32 to vector<8x16xf32>
      %24 = arith.mulf %23, %19 : vector<8x16xf32>
      %25 = arith.subf %22, %24 : vector<8x16xf32>
      %cst_11 = arith.constant 0.000000e+00 : f32
      %26 = vector.broadcast %cst_11 : f32 to vector<8x16xf32>
      %27 = arith.maximumf %25, %26 : vector<8x16xf32>
      %28 = math.sqrt %27 : vector<8x16xf32>
      %29 = arith.index_cast %arg1 : i32 to index
      %c0_12 = arith.constant 0 : index
      %c0_13 = arith.constant 0 : index
      %30 = vector.load %arg7[%29, %c0_12, %c0_13] : memref<1x8x16xf32, #tpu.memory_space<vmem>>, vector<1x8x16xf32>
      %31 = vector.shape_cast %30 : vector<1x8x16xf32> to vector<8x16xf32>
      %32 = vector.shape_cast %28 : vector<8x16xf32> to vector<1x8x16xf32>
      tpu.vector_store %arg7[%29, %c0_12, %c0_13], %32 {strides = array<i32>} : memref<1x8x16xf32, #tpu.memory_space<vmem>>, vector<1x8x16xf32>,
      %c0_14 = arith.constant 0 : index
      %c0_15 = arith.constant 0 : index
      %33 = vector.load %arg8[%c0_14, %c0_15] : memref<1x1xf32, #tpu.memory_space<vmem>>, vector<1x1xf32>
      %34 = vector.shape_cast %28 : vector<8x16xf32> to vector<1x8x16xf32>
      %cst_16 = arith.constant dense<0x7F800000> : vector<1xf32>
      %35 = vector.multi_reduction <minimumf>, %34, %cst_16 [1, 2] : vector<1x8x16xf32> to vector<1xf32>
      %36 = vector.shape_cast %35 : vector<1xf32> to vector<1x1x1xf32>
      %37 = vector.extract %36[0, 0, 0] : f32 from vector<1x1x1xf32>
      %38 = vector.broadcast %37 : f32 to vector<1x1xf32>
      %39 = arith.minimumf %33, %38 : vector<1x1xf32>
      %c0_17 = arith.constant 0 : index
      %c0_18 = arith.constant 0 : index
      %40 = vector.load %arg8[%c0_17, %c0_18] : memref<1x1xf32, #tpu.memory_space<vmem>>, vector<1x1xf32>
      tpu.vector_store %arg8[%c0_17, %c0_18], %39 {strides = array<i32>} : memref<1x1xf32, #tpu.memory_space<vmem>>, vector<1x1xf32>,
      %c0_19 = arith.constant 0 : index
      %c0_20 = arith.constant 0 : index
      %41 = vector.load %arg9[%c0_19, %c0_20] : memref<1x1xf32, #tpu.memory_space<vmem>>, vector<1x1xf32>
      %42 = vector.shape_cast %28 : vector<8x16xf32> to vector<1x8x16xf32>
      %cst_21 = arith.constant dense<0xFF800000> : vector<1xf32>
      %43 = vector.multi_reduction <maximumf>, %42, %cst_21 [1, 2] : vector<1x8x16xf32> to vector<1xf32>
      %44 = vector.shape_cast %43 : vector<1xf32> to vector<1x1x1xf32>
      %45 = vector.extract %44[0, 0, 0] : f32 from vector<1x1x1xf32>
      %46 = vector.broadcast %45 : f32 to vector<1x1xf32>
      %47 = arith.maximumf %41, %46 : vector<1x1xf32>
      %c0_22 = arith.constant 0 : index
      %c0_23 = arith.constant 0 : index
      %48 = vector.load %arg9[%c0_22, %c0_23] : memref<1x1xf32, #tpu.memory_space<vmem>>, vector<1x1xf32>
      tpu.vector_store %arg9[%c0_22, %c0_23], %47 {strides = array<i32>} : memref<1x1xf32, #tpu.memory_space<vmem>>, vector<1x1xf32>,
    } else {
    }
    %c1_i32 = arith.constant 1 : i32
    %8 = arith.cmpi eq, %arg0, %c1_i32 : i32
    %9 = arith.extui %8 : i1 to i32
    %c0_i32_4 = arith.constant 0 : i32
    %10 = arith.cmpi ne, %9, %c0_i32_4 : i32
    scf.if %10 {
      %11 = arith.index_cast %arg1 : i32 to index
      %c0 = arith.constant 0 : index
      %c0_5 = arith.constant 0 : index
      %12 = vector.load %arg7[%11, %c0, %c0_5] : memref<1x8x16xf32, #tpu.memory_space<vmem>>, vector<1x8x16xf32>
      %13 = vector.shape_cast %12 : vector<1x8x16xf32> to vector<8x16xf32>
      %c0_6 = arith.constant 0 : index
      %c0_7 = arith.constant 0 : index
      %14 = vector.load %arg8[%c0_6, %c0_7] : memref<1x1xf32, #tpu.memory_space<vmem>>, vector<1x1xf32>
      %c0_8 = arith.constant 0 : index
      %c0_9 = arith.constant 0 : index
      %15 = vector.load %arg9[%c0_8, %c0_9] : memref<1x1xf32, #tpu.memory_space<vmem>>, vector<1x1xf32>
      %16 = arith.subf %15, %14 : vector<1x1xf32>
      %cst = arith.constant 2.000000e+00 : f32
      %17 = vector.broadcast %cst : f32 to vector<1x1xf32>
      %18 = arith.divf %17, %16 : vector<1x1xf32>
      %19 = vector.broadcast %14 : vector<1x1xf32> to vector<8x16xf32>
      %20 = arith.subf %13, %19 : vector<8x16xf32>
      %21 = vector.broadcast %18 : vector<1x1xf32> to vector<8x16xf32>
      %22 = arith.mulf %20, %21 : vector<8x16xf32>
      %cst_10 = arith.constant 1.000000e+00 : f32
      %23 = vector.broadcast %cst_10 : f32 to vector<8x16xf32>
      %24 = arith.subf %22, %23 : vector<8x16xf32>
      %cst_11 = arith.constant 0.000000e+00 : f32
      %25 = vector.broadcast %cst_11 : f32 to vector<8x48xf32>
      %c0_12 = arith.constant 0 : index
      %c80 = arith.constant 80 : index
      %26 = vector.load %arg10[%c0_12, %c80] : memref<8x128xf32, #tpu.memory_space<vmem>>, vector<8x48xf32>
      tpu.vector_store %arg10[%c0_12, %c80], %25 {strides = array<i32>} : memref<8x128xf32, #tpu.memory_space<vmem>>, vector<8x48xf32>,
      %cst_13 = arith.constant 1.000000e+00 : f32
      %27 = vector.broadcast %cst_13 : f32 to vector<8x16xf32>
      %c0_14 = arith.constant 0 : index
      %c0_15 = arith.constant 0 : index
      %28 = vector.load %arg10[%c0_14, %c0_15] : memref<8x128xf32, #tpu.memory_space<vmem>>, vector<8x16xf32>
      tpu.vector_store %arg10[%c0_14, %c0_15], %24 {strides = array<i32>} : memref<8x128xf32, #tpu.memory_space<vmem>>, vector<8x16xf32>,
      %cst_16 = arith.constant 1.500000e+00 : f32
      %29 = vector.broadcast %cst_16 : f32 to vector<8x16xf32>
      %30 = arith.mulf %29, %24 : vector<8x16xf32>
      %31 = arith.mulf %30, %24 : vector<8x16xf32>
      %cst_17 = arith.constant 5.000000e-01 : f32
      %32 = vector.broadcast %cst_17 : f32 to vector<8x16xf32>
      %33 = arith.mulf %32, %27 : vector<8x16xf32>
      %34 = arith.subf %31, %33 : vector<8x16xf32>
      %c0_18 = arith.constant 0 : index
      %c16 = arith.constant 16 : index
      %35 = vector.load %arg10[%c0_18, %c16] : memref<8x128xf32, #tpu.memory_space<vmem>>, vector<8x16xf32>
      tpu.vector_store %arg10[%c0_18, %c16], %34 {strides = array<i32>} : memref<8x128xf32, #tpu.memory_space<vmem>>, vector<8x16xf32>,
      %cst_19 = arith.constant 1.66666663 : f32
      %36 = vector.broadcast %cst_19 : f32 to vector<8x16xf32>
      %37 = arith.mulf %36, %24 : vector<8x16xf32>
      %38 = arith.mulf %37, %34 : vector<8x16xf32>
      %cst_20 = arith.constant 0.666666686 : f32
      %39 = vector.broadcast %cst_20 : f32 to vector<8x16xf32>
      %40 = arith.mulf %39, %24 : vector<8x16xf32>
      %41 = arith.subf %38, %40 : vector<8x16xf32>
      %c0_21 = arith.constant 0 : index
      %c32 = arith.constant 32 : index
      %42 = vector.load %arg10[%c0_21, %c32] : memref<8x128xf32, #tpu.memory_space<vmem>>, vector<8x16xf32>
      tpu.vector_store %arg10[%c0_21, %c32], %41 {strides = array<i32>} : memref<8x128xf32, #tpu.memory_space<vmem>>, vector<8x16xf32>,
      %cst_22 = arith.constant 1.750000e+00 : f32
      %43 = vector.broadcast %cst_22 : f32 to vector<8x16xf32>
      %44 = arith.mulf %43, %24 : vector<8x16xf32>
      %45 = arith.mulf %44, %41 : vector<8x16xf32>
      %cst_23 = arith.constant 7.500000e-01 : f32
      %46 = vector.broadcast %cst_23 : f32 to vector<8x16xf32>
      %47 = arith.mulf %46, %34 : vector<8x16xf32>
      %48 = arith.subf %45, %47 : vector<8x16xf32>
      %c0_24 = arith.constant 0 : index
      %c48 = arith.constant 48 : index
      %49 = vector.load %arg10[%c0_24, %c48] : memref<8x128xf32, #tpu.memory_space<vmem>>, vector<8x16xf32>
      tpu.vector_store %arg10[%c0_24, %c48], %48 {strides = array<i32>} : memref<8x128xf32, #tpu.memory_space<vmem>>, vector<8x16xf32>,
      %cst_25 = arith.constant 1.800000e+00 : f32
      %50 = vector.broadcast %cst_25 : f32 to vector<8x16xf32>
      %51 = arith.mulf %50, %24 : vector<8x16xf32>
      %52 = arith.mulf %51, %48 : vector<8x16xf32>
      %cst_26 = arith.constant 8.000000e-01 : f32
      %53 = vector.broadcast %cst_26 : f32 to vector<8x16xf32>
      %54 = arith.mulf %53, %41 : vector<8x16xf32>
      %55 = arith.subf %52, %54 : vector<8x16xf32>
      %c0_27 = arith.constant 0 : index
      %c64 = arith.constant 64 : index
      %56 = vector.load %arg10[%c0_27, %c64] : memref<8x128xf32, #tpu.memory_space<vmem>>, vector<8x16xf32>
      tpu.vector_store %arg10[%c0_27, %c64], %55 {strides = array<i32>} : memref<8x128xf32, #tpu.memory_space<vmem>>, vector<8x16xf32>,
      %c0_28 = arith.constant 0 : index
      %c0_29 = arith.constant 0 : index
      %57 = vector.load %arg10[%c0_28, %c0_29] : memref<8x128xf32, #tpu.memory_space<vmem>>, vector<8x128xf32>
      %c0_30 = arith.constant 0 : index
      %c0_31 = arith.constant 0 : index
      %58 = vector.load %arg4[%c0_30, %c0_31] : memref<128x32xf32, #tpu.memory_space<vmem>>, vector<128x32xf32>
      %cst_32 = arith.constant dense<0.000000e+00> : vector<8x32xf32>
      %59 = tpu.matmul %57, %58, %cst_32 {dimension_numbers = #tpu.dot_dimension_numbers<[1], [0], [0], [1], [0, 0, 1, 1], [], []>} : vector<8x128xf32>, vector<128x32xf32>, vector<8x32xf32> -> vector<8x32xf32>
      %c0_33 = arith.constant 0 : index
      %c0_34 = arith.constant 0 : index
      %60 = vector.load %arg5[%c0_33, %c0_34] : memref<1x32xf32, #tpu.memory_space<vmem>>, vector<1x32xf32>
      %61 = vector.broadcast %60 : vector<1x32xf32> to vector<8x32xf32>
      %62 = arith.addf %59, %61 : vector<8x32xf32>
      %c0_35 = arith.constant 0 : index
      %c0_36 = arith.constant 0 : index
      %63 = vector.load %arg6[%c0_35, %c0_36] : memref<8x32xf32, #tpu.memory_space<vmem>>, vector<8x32xf32>
      tpu.vector_store %arg6[%c0_35, %c0_36], %62 {strides = array<i32>} : memref<8x32xf32, #tpu.memory_space<vmem>>, vector<8x32xf32>,
    } else {
    }
    return
  }
  func.func @transform_0(%arg0: i32, %arg1: i32) -> (i32, i32) {
    %c1_i32 = arith.constant 1 : i32
    %0 = arith.subi %c1_i32, %arg0 : i32
    %1 = arith.muli %arg1, %0 : i32
    %c0_i32 = arith.constant 0 : i32
    %2 = arith.muli %c0_i32, %arg0 : i32
    %3 = arith.addi %1, %2 : i32
    %c0_i32_0 = arith.constant 0 : i32
    %c0_i32_1 = arith.constant 0 : i32
    return %3, %c0_i32_0 : i32, i32
  }
  func.func @transform_1(%arg0: i32, %arg1: i32) -> (i32, i32) {
    %c0_i32 = arith.constant 0 : i32
    %c0_i32_0 = arith.constant 0 : i32
    %c0_i32_1 = arith.constant 0 : i32
    return %c0_i32, %c0_i32_0 : i32, i32
  }
  func.func @transform_2(%arg0: i32, %arg1: i32) -> (i32, i32) {
    %c0_i32 = arith.constant 0 : i32
    %c0_i32_0 = arith.constant 0 : i32
    %c0_i32_1 = arith.constant 0 : i32
    return %c0_i32, %c0_i32_0 : i32, i32
  }
  func.func @transform_3(%arg0: i32, %arg1: i32) -> (i32, i32) {
    %c0_i32 = arith.constant 0 : i32
    %c0_i32_0 = arith.constant 0 : i32
    %c0_i32_1 = arith.constant 0 : i32
    return %c0_i32, %c0_i32_0 : i32, i32
  }
  func.func @transform_4(%arg0: i32, %arg1: i32) -> (i32, i32) {
    %0 = arith.muli %arg1, %arg0 : i32
    %c0_i32 = arith.constant 0 : i32
    %c0_i32_0 = arith.constant 0 : i32
    return %0, %c0_i32 : i32, i32
  }
}

</mosaic_0001>

<llo_original>
// kernel: tpu_custom_call.1
$region0: #{tpu_custom_call.1}
  #allocation0 [shape = 'u32[]', space=smem, size = 0x4, offset = 0x4, fixed_abs, tag = 'smem constant byte address 0x4 - core index']
  #allocation1 [shape = 'u32[144,128]{1,0:T(1,128)}', space=vmem, size = 0x12000, scoped, tag = 'internal scratch']
  #allocation2 [shape = 'f32[1,8,16]{2,1,0:T(8,128)}', space=vmem, size = 0x1000, scoped, tag = 'scratch operand']
  #allocation3 [shape = 'f32[1,1]{1,0:T(1,128)}', space=vmem, size = 0x200, scoped, tag = 'scratch operand']
  #allocation4 [shape = 'f32[1,1]{1,0:T(1,128)}', space=vmem, size = 0x200, scoped, tag = 'scratch operand']
  #allocation5 [shape = 'f32[8,128]{1,0:T(8,128)}', space=vmem, size = 0x1000, scoped, tag = 'scratch operand']
  %s0 = inlined_call_operand.vmem [shape: f32[8,32], index: 0, kind: input, shape index: {}]
  %s1 = inlined_call_operand.vmem [shape: f32[32,16], index: 1, kind: input, shape index: {}]
  %s2 = inlined_call_operand.vmem [shape: f32[128,32], index: 2, kind: input, shape index: {}]
  %s3 = inlined_call_operand.vmem [shape: f32[1,32], index: 3, kind: input, shape index: {}]
  %s4 = inlined_call_operand.hbm [shape: f32[8,32], index: 4, kind: output, shape index: {}]
  %s5 = sld [smem:[#allocation0]]
  $region61: #{tpu_custom_call.1} parent=0
    _
  %s7 = ssub.s32 1, %s5
  %s8 = scalar_select 0, %s7, %s5
  $region1: #{tpu_custom_call.1} parent=0
    #allocation6 [shape = 'u8[8192]{0}', space=vmem, size = 0x2000, scoped, tag = 'output window, operand 0']
    #allocation7 [shape = 's32[2]{0}', space=sflag, size = 0x8, scoped, tag = 'scoped memory for tpu_custom_call.1']
    %9 = vsyncpa [#allocation7], 0
    %s10 = scalar_lea.sflag [#allocation7], 1
    %11 = vsyncpa %s10, 0
    loop: start=0, step=1, limit=4
    $region2: #{tpu_custom_call.1} parent=1 // loop_pre_header
      _
    $region3: #{tpu_custom_call.1} parent=1 // loop_header
      %s13 = sphi 0, %s17
      %p14 = scmp.ge.s32.totalorder %s13, 4
      %s20 = sphi 0, %s32
      %s21 = sphi 0, %s28
      %s22 = sphi 0, %s20
      %s23 = sphi 0, %s21
      %s24 = sphi 0, %s22
      %s25 = sphi 0, %s23
      %s39 = sphi 0, %s41
      %s42 = sphi 0, %s39
      %s43 = sphi 0, %s42
      %s59 = sphi 0, %s43
      %s63 = sphi 0, %s63
      %s65 = sphi 0, %s63
      %s66 = sphi 0, %s65
      %s80 = sphi 0, %s66
      %s84 = sphi 0, %s84
      %s86 = sphi 0, %s84
      %s87 = sphi 0, %s86
      %s101 = sphi 0, %s87
      %s105 = sphi 0, %s105
      %s107 = sphi 0, %s105
      %s108 = sphi 0, %s107
      %s122 = sphi 0, %s108
      %s130 = sphi 0, %s132
      %s133 = sphi 0, %s130
      %s134 = sphi 0, %s133
      %s150 = sphi 0, %s134
    $region4: #{tpu_custom_call.1} parent=1 // loop_header_branch
      %16 = sbr.rel (%p14) target = $region8
    $region5: #{tpu_custom_call.1} parent=1 // loop_body
      %s18 = ssub.s32 %s13, 1
      %s19 = ssub.s32 %s13, 2
      %s26 = sadd.s32 1, %s21
      %p27 = scmp.ge.s32.totalorder %s26, 1
      %s28 = scalar_select %p27, 0, %s26
      %s29 = sadd.s32 1, %s20
      %s30 = scalar_select %p27, %s29, %s20
      %p31 = scmp.ge.s32.totalorder %s30, 2
      %s32 = scalar_select %p31, 0, %s30
      %s33 = ssub.s32 1, %s20
      %s34 = smul.u32 %s21, %s33
      %s35 = ssub.s32 1, %s32
      %s36 = smul.u32 %s28, %s35
      %s37 = ssub.s32 %s34, %s36
      %p38 = scmp.eq.s32.totalorder %s37, 0
      %s40 = sadd.s32 %s39, 1
      %s41 = scalar_select %p38, %s39, %s40
      %p44 = pneg %p38
      %p45 = scmp.eq.s32.totalorder %s13, 1
      %p46 = por %p44, %p45
      %p47 = scmp.ne.s32.totalorder %s39, %s42
      %p48 = scmp.eq.s32.totalorder %s13, 0
      %p49 = por %p47, %p48
      %p50 = scmp.ne.s32.totalorder %s39, %s42
      %p51 = scmp.eq.s32.totalorder %s18, 1
      %p52 = por %p50, %p51
      %p53 = scmp.ne.s32.totalorder %s42, %s43
      %p54 = scmp.eq.s32.totalorder %s18, 0
      %p55 = por %p53, %p54
      %p56 = scmp.ne.s32.totalorder %s42, %s43
      %p57 = scmp.eq.s32.totalorder %s19, 1
      %p58 = por %p56, %p57
      %p60 = scmp.ne.s32.totalorder %s43, %s59
      %p61 = scmp.eq.s32.totalorder %s19, 0
      %p62 = por %p60, %p61
      %s64 = sadd.s32 %s63, 1
      %p67 = scmp.eq.s32.totalorder %s13, 1
      %p68 = scmp.ne.s32.totalorder %s63, %s65
      %p69 = scmp.eq.s32.totalorder %s13, 0
      %p70 = por %p68, %p69
      %p71 = scmp.ne.s32.totalorder %s63, %s65
      %p72 = scmp.eq.s32.totalorder %s18, 1
      %p73 = por %p71, %p72
      %p74 = scmp.ne.s32.totalorder %s65, %s66
      %p75 = scmp.eq.s32.totalorder %s18, 0
      %p76 = por %p74, %p75
      %p77 = scmp.ne.s32.totalorder %s65, %s66
      %p78 = scmp.eq.s32.totalorder %s19, 1
      %p79 = por %p77, %p78
      %p81 = scmp.ne.s32.totalorder %s66, %s80
      %p82 = scmp.eq.s32.totalorder %s19, 0
      %p83 = por %p81, %p82
      %s85 = sadd.s32 %s84, 1
      %p88 = scmp.eq.s32.totalorder %s13, 1
      %p89 = scmp.ne.s32.totalorder %s84, %s86
      %p90 = scmp.eq.s32.totalorder %s13, 0
      %p91 = por %p89, %p90
      %p92 = scmp.ne.s32.totalorder %s84, %s86
      %p93 = scmp.eq.s32.totalorder %s18, 1
      %p94 = por %p92, %p93
      %p95 = scmp.ne.s32.totalorder %s86, %s87
      %p96 = scmp.eq.s32.totalorder %s18, 0
      %p97 = por %p95, %p96
      %p98 = scmp.ne.s32.totalorder %s86, %s87
      %p99 = scmp.eq.s32.totalorder %s19, 1
      %p100 = por %p98, %p99
      %p102 = scmp.ne.s32.totalorder %s87, %s101
      %p103 = scmp.eq.s32.totalorder %s19, 0
      %p104 = por %p102, %p103
      %s106 = sadd.s32 %s105, 1
      %p109 = scmp.eq.s32.totalorder %s13, 1
      %p110 = scmp.ne.s32.totalorder %s105, %s107
      %p111 = scmp.eq.s32.totalorder %s13, 0
      %p112 = por %p110, %p111
      %p113 = scmp.ne.s32.totalorder %s105, %s107
      %p114 = scmp.eq.s32.totalorder %s18, 1
      %p115 = por %p113, %p114
      %p116 = scmp.ne.s32.totalorder %s107, %s108
      %p117 = scmp.eq.s32.totalorder %s18, 0
      %p118 = por %p116, %p117
      %p119 = scmp.ne.s32.totalorder %s107, %s108
      %p120 = scmp.eq.s32.totalorder %s19, 1
      %p121 = por %p119, %p120
      %p123 = scmp.ne.s32.totalorder %s108, %s122
      %p124 = scmp.eq.s32.totalorder %s19, 0
      %p125 = por %p123, %p124
      %s126 = smul.u32 %s21, %s20
      %s127 = smul.u32 %s28, %s32
      %s128 = ssub.s32 %s126, %s127
      %p129 = scmp.eq.s32.totalorder %s128, 0
      %s131 = sadd.s32 %s130, 1
      %s132 = scalar_select %p129, %s130, %s131
      %p135 = pneg %p129
      %p136 = scmp.eq.s32.totalorder %s13, 1
      %p137 = por %p135, %p136
      %p138 = scmp.ne.s32.totalorder %s130, %s133
      %p139 = scmp.eq.s32.totalorder %s13, 0
      %p140 = por %p138, %p139
      %p141 = scmp.ne.s32.totalorder %s130, %s133
      %p142 = scmp.eq.s32.totalorder %s18, 1
      %p143 = por %p141, %p142
      %p144 = scmp.ne.s32.totalorder %s133, %s134
      %p145 = scmp.eq.s32.totalorder %s18, 0
      %p146 = por %p144, %p145
      %p147 = scmp.ne.s32.totalorder %s133, %s134
      %p148 = scmp.eq.s32.totalorder %s19, 1
      %p149 = por %p147, %p148
      %p151 = scmp.ne.s32.totalorder %s134, %s150
      %p152 = scmp.eq.s32.totalorder %s19, 0
      %p153 = por %p151, %p152
      %p154 = scmp.le.s32.totalorder 1, %s13
      %p155 = scmp.lt.s32.totalorder %s13, 3
      %p156 = pnand %p154, %p155
      %p157 = pneg %p156
      // Predicated region
      $region9: #{tpu_custom_call.1} parent=5 // pred_check
        _
      $region10: #{tpu_custom_call.1} parent=5 // pred_check_branch
        %159 = sbr.rel (%p156) target = $region12
      $region11: #{tpu_custom_call.1} parent=5 // pred_region
        %s160 = ssub.s32 %s13, 1
        // Predicated region
        $region13: #{tpu_custom_call.1} parent=11 // pred_check
          %p161 = pneg %p76
        $region14: #{tpu_custom_call.1} parent=11 // pred_check_branch
          %163 = sbr.rel (%p161) target = $region16
        $region15: #{tpu_custom_call.1} parent=11 // pred_region
          _
        $region16: #{tpu_custom_call.1} parent=11 // pred_fallthru
          _
        // Predicated region
        $region17: #{tpu_custom_call.1} parent=11 // pred_check
          %p164 = pneg %p97
        $region18: #{tpu_custom_call.1} parent=11 // pred_check_branch
          %166 = sbr.rel (%p164) target = $region20
        $region19: #{tpu_custom_call.1} parent=11 // pred_region
          _
        $region20: #{tpu_custom_call.1} parent=11 // pred_fallthru
          _
        // Predicated region
        $region21: #{tpu_custom_call.1} parent=11 // pred_check
          %p167 = pneg %p118
        $region22: #{tpu_custom_call.1} parent=11 // pred_check_branch
          %169 = sbr.rel (%p167) target = $region24
        $region23: #{tpu_custom_call.1} parent=11 // pred_region
          _
        $region24: #{tpu_custom_call.1} parent=11 // pred_fallthru
          _
      $region12: #{tpu_custom_call.1} parent=5 // pred_fallthru
        _
      %p170 = scmp.lt.s32.totalorder %s13, 2
      // Predicated region
      $region25: #{tpu_custom_call.1} parent=5 // pred_check
        %p171 = pneg %p170
      $region26: #{tpu_custom_call.1} parent=5 // pred_check_branch
        %173 = sbr.rel (%p171) target = $region28
      $region27: #{tpu_custom_call.1} parent=5 // pred_region
        // Predicated region
        $region29: #{tpu_custom_call.1} parent=27 // pred_check
          %p174 = pneg %p49
        $region30: #{tpu_custom_call.1} parent=27 // pred_check_branch
          %176 = sbr.rel (%p174) target = $region32
        $region31: #{tpu_custom_call.1} parent=27 // pred_region
          %s177 = ssub.s32 1, %s20
          %s178 = smul.u32 %s21, %s177
          %p179 = scmp.lt.s32.totalorder %s178, 0
          %s180 = scalar_select %p179, %s178, 0
          %s181 = smul.addr %s180, 8
          %s182 = scalar_lea.vmem %s0, %s181
          %s183 = ssub.s32 1, %s20
          %s184 = smul.u32 %s21, %s183
        $region32: #{tpu_custom_call.1} parent=27 // pred_fallthru
          _
      $region28: #{tpu_custom_call.1} parent=5 // pred_fallthru
        _
      %p185 = scmp.le.s32.totalorder 1, %s13
      %p186 = scmp.lt.s32.totalorder %s13, 3
      %p187 = pnand %p185, %p186
      %p188 = pneg %p187
      // Predicated region
      $region33: #{tpu_custom_call.1} parent=5 // pred_check
        _
      $region34: #{tpu_custom_call.1} parent=5 // pred_check_branch
        %190 = sbr.rel (%p187) target = $region36
      $region35: #{tpu_custom_call.1} parent=5 // pred_region
        %s191 = ssub.s32 %s13, 1
        %s192 = ssub.s32 1, %s22
        %s193 = smul.u32 %s23, %s192
        %p194 = scmp.lt.s32.totalorder %s193, 0
        %s195 = scalar_select %p194, %s193, 0
        %s196 = smul.addr %s195, 8
        %s197 = scalar_lea.vmem %s0, %s196
        %p198 = pneg %p55
        %p199 = pneg %p52
        %p200 = pneg %p76
        %p201 = pneg %p73
        %p202 = pneg %p97
        %p203 = pneg %p94
        %p204 = pneg %p118
        %p205 = pneg %p115
        %p206 = pneg %p146
        %p207 = pneg %p143
        %s208 = sand.u32 %s133, 1
        %s209 = scalar_lea.sflag [#allocation7], %s208
        %s210 = sand.u32 %s133, 1
        %s211 = smul.addr %s210, 8
        %s212 = scalar_lea.vmem [#allocation6], %s211
        %s213 = ssub.s32 1, %s22
        %s214 = smul.u32 %s23, %s213
        %p215 = scmp.lt.s32.totalorder %s214, 0
        %s216 = scalar_select %p215, %s214, 0
        %s217 = smul.addr %s216, 8
        %s218 = scalar_lea.vmem %s0, %s217
        %s219 = ssub.s32 1, %s22
        %s220 = smul.u32 %s23, %s219
        %s221 = smul.u32 %s23, %s22
        %p222 = scmp.eq.s32.totalorder %s22, 0
        %p223 = scmp.eq.s32.totalorder %s23, 0
        %p224 = pnand %p222, %p223
        %p225 = pneg %p224
        // Predicated region
        $region37: #{tpu_custom_call.1} parent=35 // pred_check
          _
        $region38: #{tpu_custom_call.1} parent=35 // pred_check_branch
          %227 = sbr.rel (%p224) target = $region40
        $region39: #{tpu_custom_call.1} parent=35 // pred_region
          %vm228 = vcmask 0
          %229 = vst.msk [vmem:[#allocation3] sm:$0x1] %vm228, inf
          %230 = vst.msk [vmem:[#allocation4] sm:$0x1] %vm228, -inf
        $region40: #{tpu_custom_call.1} parent=35 // pred_fallthru
          _
        // Predicated region
        $region41: #{tpu_custom_call.1} parent=35 // pred_check
          %p231 = pneg %p222
        $region42: #{tpu_custom_call.1} parent=35 // pred_check_branch
          %233 = sbr.rel (%p231) target = $region44
        $region43: #{tpu_custom_call.1} parent=35 // pred_region
          %v234 = vld [vmem:[%s218] sm:$0xff]
          %v235 = vld [vmem:[%s1] sm:$0xff]
          %v236 = vld [vmem:[%s1 + $0x8] sm:$0xff]
          %v237 = vld [vmem:[%s1 + $0x10] sm:$0xff]
          %v238 = vld [vmem:[%s1 + $0x18] sm:$0xff]
          %v239 = vmul.f32 %v234, %v234
          %vm240 = vcmask 261120
          %v241 = vsel %vm240, %v239, 0.0
          %242 = vadd.xlane.f32.xlu0 %v241
          %v243 = vpop.xlane.xlu0 %242
          %v244 = vmul.f32 %v235, %v235
          %v245 = vmul.f32 %v236, %v236
          %v246 = vmul.f32 %v237, %v237
          %v247 = vmul.f32 %v238, %v238
          %vm248 = vcmask 130048
          %v249 = vsel %vm248, %v244, 0.0
          %v250 = vsel %vm248, %v245, 0.0
          %v251 = vadd.f32 %v249, %v250
          %v252 = vsel %vm248, %v246, 0.0
          %v253 = vadd.f32 %v251, %v252
          %v254 = vsel %vm248, %v247, 0.0
          %v255 = vadd.f32 %v253, %v254
          %v256 = vrot.slane %v255, 4
          %v257 = vadd.f32 %v255, %v256
          %v258 = vrot.slane %v257, 2
          %v259 = vadd.f32 %v257, %v258
          %v260 = vrot.slane %v259, 1
          %v261 = vadd.f32 %v259, %v260
          %v263 = vsel %vm240, %v234, 0
          %265 = vmatprep.subr.mxu0 0.0
          %266 = vmatpush1.msra.mxu0 0.0
          %267 = vmatprep.subr.mxu0 0.0
          %268 = vmatpush1.msra.mxu0 0.0
          %269 = vmatprep.subr.mxu0 0.0
          %270 = vmatpush1.msra.mxu0 0.0
          %271 = vmatprep.subr.mxu0 0.0
          %272 = vmatpush1.msra.mxu0 0.0
          %273 = vmatprep.subr.mxu0 0.0
          %274 = vmatpush1.msra.mxu0 0.0
          %275 = vmatprep.subr.mxu0 0.0
          %276 = vmatpush1.msra.mxu0 0.0
          %277 = vmatprep.subr.mxu0 0.0
          %278 = vmatpush1.msra.mxu0 0.0
          %279 = vmatprep.subr.mxu0 0.0
          %280 = vmatpush1.msra.mxu0 0.0
          %281 = vmatprep.subr.mxu0 0.0
          %282 = vmatpush1.msra.mxu0 0.0
          %283 = vmatprep.subr.mxu0 0.0
          %284 = vmatpush1.msra.mxu0 0.0
          %285 = vmatprep.subr.mxu0 0.0
          %286 = vmatpush1.msra.mxu0 0.0
          %287 = vmatprep.subr.mxu0 0.0
          %288 = vmatpush1.msra.mxu0 0.0
          %289 = vmatprep.subr.mxu0 0.0
          %290 = vmatpush1.msra.mxu0 %v238
          %291 = vmatprep.subr.mxu0 0.0
          %292 = vmatpush1.msra.mxu0 %v237
          %293 = vmatprep.subr.mxu0 0.0
          %294 = vmatpush1.msra.mxu0 %v236
          %295 = vmatprep.subr.mxu0 0.0
          %296 = vmatpush1.msra.mxu0 %v235
          %297 = vmatprep.subr.mxu0 0.0
          %298 = vmatpush2.msra.mxu0 0.0
          %299 = vmatprep.subr.mxu0 0.0
          %300 = vmatpush2.msra.mxu0 0.0
          %301 = vmatprep.subr.mxu0 0.0
          %302 = vmatpush2.msra.mxu0 0.0
          %303 = vmatprep.subr.mxu0 0.0
          %304 = vmatpush2.msra.mxu0 0.0
          %305 = vmatprep.subr.mxu0 0.0
          %306 = vmatpush2.msra.mxu0 0.0
          %307 = vmatprep.subr.mxu0 0.0
          %308 = vmatpush2.msra.mxu0 0.0
          %309 = vmatprep.subr.mxu0 0.0
          %310 = vmatpush2.msra.mxu0 0.0
          %311 = vmatprep.subr.mxu0 0.0
          %312 = vmatpush2.msra.mxu0 0.0
          %313 = vmatprep.subr.mxu0 0.0
          %314 = vmatpush2.msra.mxu0 0.0
          %315 = vmatprep.subr.mxu0 0.0
          %316 = vmatpush2.msra.mxu0 0.0
          %317 = vmatprep.subr.mxu0 0.0
          %318 = vmatpush2.msra.mxu0 0.0
          %319 = vmatprep.subr.mxu0 0.0
          %320 = vmatpush2.msra.mxu0 0.0
          %321 = vmatprep.subr.mxu0 0.0
          %322 = vmatpush2.msra.mxu0 0.0
          %323 = vmatprep.subr.mxu0 0.0
          %324 = vmatpush2.msra.mxu0 0.0
          %325 = vmatprep.subr.mxu0 0.0
          %326 = vmatpush2.msra.mxu0 0.0
          %327 = vmatprep.subr.mxu0 0.0
          %328 = vmatpush2.msra.mxu0 0.0
          %329 = vmatprep.mubr.f32.mxu0 0.0
          %330 = vmatmul.mubr.f32.gmra.mxu0 %v263
          %v331 = vpop.f32.mrf.mxu0
          %v332 = vadd.f32 0.0, %v331
          %v333 = vpop.f32.mrf.mxu0
          %334 = vdwg.mxu0
          %v335 = vadd.f32 %v243, %v261
          %v336 = vmul.f32 %v332, 2.0
          %v337 = vsub.f32 %v335, %v336
          %v338 = vmax.f32 %v337, 0.0
          %v339 = vrsqrt.pop %v338
          %v340 = vmul.f32 %v338, %v339
          %vm341 = vcmp.eq.f32.partialorder %v338, inf
          %v342 = vsel %vm341, %v338, %v340
          %vm343 = vcmp.eq.f32.partialorder %v338, 0.0
          %v344 = vand.u32 %v338, 2147483648
          %v345 = vsel %vm343, %v344, %v342
          %s346 = smul.u32 %s23, 8
          %s347 = scalar_lea.vmem [#allocation2], %s346
          %348 = vst.msk [vmem:[%s347] sm:$0xff] %vm248, %v345
          %v349 = vld [vmem:[#allocation3] sm:$0x1]
          %v350 = vsel %vm248, %v345, inf
          %351 = vmin.xlane.f32.xlu0 %v350
          %v352 = vpop.xlane.xlu0 %351
          %v353 = vrot.slane %v352, 4
          %v354 = vmin.f32 %v352, %v353
          %v355 = vrot.slane %v354, 2
          %v356 = vmin.f32 %v354, %v355
          %v357 = vrot.slane %v356, 1
          %v358 = vmin.f32 %v356, %v357
          %s359 = vtos %v358
          %v360 = vstv %s359
          %v361 = vmin.f32 %v349, %v360
          %vm362 = vcmask 0
          %363 = vst.msk [vmem:[#allocation3] sm:$0x1] %vm362, %v361
          %v364 = vld [vmem:[#allocation4] sm:$0x1]
          %v365 = vsel %vm248, %v345, -inf
          %366 = vmax.xlane.f32.xlu0 %v365
          %v367 = vpop.xlane.xlu0 %366
          %v368 = vrot.slane %v367, 4
          %v369 = vmax.f32 %v367, %v368
          %v370 = vrot.slane %v369, 2
          %v371 = vmax.f32 %v369, %v370
          %v372 = vrot.slane %v371, 1
          %v373 = vmax.f32 %v371, %v372
          %s374 = vtos %v373
          %v375 = vstv %s374
          %v376 = vmax.f32 %v364, %v375
          %377 = vst.msk [vmem:[#allocation4] sm:$0x1] %vm362, %v376
        $region44: #{tpu_custom_call.1} parent=35 // pred_fallthru
          _
        %p378 = scmp.eq.s32.totalorder %s22, 1
        // Predicated region
        $region45: #{tpu_custom_call.1} parent=35 // pred_check
          %p379 = pneg %p378
        $region46: #{tpu_custom_call.1} parent=35 // pred_check_branch
          %381 = sbr.rel (%p379) target = $region48
        $region47: #{tpu_custom_call.1} parent=35 // pred_region
          %s382 = smul.u32 %s23, 8
          %s383 = scalar_lea.vmem [#allocation2], %s382
          %v384 = vld [vmem:[%s383] sm:$0xff]
          %v385 = vld [vmem:[#allocation3] sm:$0x1]
          %v386 = vld [vmem:[#allocation4] sm:$0x1]
          %v387 = vsub.f32 %v386, %v385
          %v388 = vrcp.pop %v387
          %v389 = vmul.f32 2.0, %v388
          %v391 = vlaneseq
          %v392 = vshrl.u32 %v391, 7
          %v393 = vsub.s32 0, %v392
          %v394 = vrot.slane %v385, %v393
          %395 = vset.pattern.permute.xlu0 0
          %396 = vperm.xlu0 %395, %v394
          %v397 = vpop.permute.xlu0 %396
          %v399 = vsub.f32 %v384, %v397
          %v401 = vlaneseq
          %v402 = vshrl.u32 %v401, 7
          %v403 = vsub.s32 0, %v402
          %v404 = vrot.slane %v389, %v403
          %405 = vset.pattern.permute.xlu0 0
          %406 = vperm.xlu0 %405, %v404
          %v407 = vpop.permute.xlu0 %406
          %v409 = vmul.f32 %v399, %v407
          %v410 = vsub.f32 %v409, 1.0
          %vm411 = vcmask 1048192
          %412 = vst.msk [vmem:[#allocation5] sm:$0xff] %vm411, 0.0
          %vm413 = vcmask 130048
          %414 = vst.msk [vmem:[#allocation5] sm:$0xff] %vm413, %v410
          %v415 = vmul.f32 %v410, 1.5
          %v416 = vmul.f32 %v415, %v410
          %v417 = vsub.f32 %v416, 0.5
          %419 = vrot.lane.b32.xlu0 %v417, 16
          %v420 = vpop.permute.xlu0 %419
          %vm422 = vcmask 261248
          %423 = vst.msk [vmem:[#allocation5] sm:$0xff] %vm422, %v420
          %v424 = vmul.f32 %v410, 1.6666666
          %v425 = vmul.f32 %v424, %v417
          %v426 = vmul.f32 %v410, 0.6666667
          %v427 = vsub.f32 %v425, %v426
          %429 = vrot.lane.b32.xlu0 %v427, 32
          %v430 = vpop.permute.xlu0 %429
          %vm432 = vcmask 392448
          %433 = vst.msk [vmem:[#allocation5] sm:$0xff] %vm432, %v430
          %v434 = vmul.f32 %v410, 1.75
          %v435 = vmul.f32 %v434, %v427
          %v436 = vmul.f32 %v417, 0.75
          %v437 = vsub.f32 %v435, %v436
          %439 = vrot.lane.b32.xlu0 %v437, 48
          %v440 = vpop.permute.xlu0 %439
          %vm442 = vcmask 523648
          %443 = vst.msk [vmem:[#allocation5] sm:$0xff] %vm442, %v440
          %v444 = vmul.f32 %v410, 1.8
          %v445 = vmul.f32 %v444, %v437
          %v446 = vmul.f32 %v427, 0.8
          %v447 = vsub.f32 %v445, %v446
          %449 = vrot.lane.b32.xlu0 %v447, 64
          %v450 = vpop.permute.xlu0 %449
          %vm452 = vcmask 654848
          %453 = vst.msk [vmem:[#allocation5] sm:$0xff] %vm452, %v450
          %v454 = vld [vmem:[#allocation5] sm:$0xff]
          %v455 = vld [vmem:[%s2] sm:$0xff]
          %v456 = vld [vmem:[%s2 + $0x8] sm:$0xff]
          %v457 = vld [vmem:[%s2 + $0x10] sm:$0xff]
          %v458 = vld [vmem:[%s2 + $0x18] sm:$0xff]
          %v459 = vld [vmem:[%s2 + $0x20] sm:$0xff]
          %v460 = vld [vmem:[%s2 + $0x28] sm:$0xff]
          %v461 = vld [vmem:[%s2 + $0x30] sm:$0xff]
          %v462 = vld [vmem:[%s2 + $0x38] sm:$0xff]
          %v463 = vld [vmem:[%s2 + $0x40] sm:$0xff]
          %v464 = vld [vmem:[%s2 + $0x48] sm:$0xff]
          %v465 = vld [vmem:[%s2 + $0x50] sm:$0xff]
          %v466 = vld [vmem:[%s2 + $0x58] sm:$0xff]
          %v467 = vld [vmem:[%s2 + $0x60] sm:$0xff]
          %v468 = vld [vmem:[%s2 + $0x68] sm:$0xff]
          %v469 = vld [vmem:[%s2 + $0x70] sm:$0xff]
          %v470 = vld [vmem:[%s2 + $0x78] sm:$0xff]
          %v471 = vld [vmem:[%s3] sm:$0x1]
          %v473 = vlaneseq
          %v474 = vshrl.u32 %v473, 7
          %v475 = vsub.s32 0, %v474
          %v476 = vrot.slane %v471, %v475
          %478 = vmatprep.subr.mxu0 0.0
          %479 = vmatpush1.msra.mxu0 %v470
          %480 = vmatprep.subr.mxu0 0.0
          %481 = vmatpush1.msra.mxu0 %v469
          %482 = vmatprep.subr.mxu0 0.0
          %483 = vmatpush1.msra.mxu0 %v468
          %484 = vmatprep.subr.mxu0 0.0
          %485 = vmatpush1.msra.mxu0 %v467
          %486 = vmatprep.subr.mxu0 0.0
          %487 = vmatpush1.msra.mxu0 %v466
          %488 = vmatprep.subr.mxu0 0.0
          %489 = vmatpush1.msra.mxu0 %v465
          %490 = vmatprep.subr.mxu0 0.0
          %491 = vmatpush1.msra.mxu0 %v464
          %492 = vmatprep.subr.mxu0 0.0
          %493 = vmatpush1.msra.mxu0 %v463
          %494 = vmatprep.subr.mxu0 0.0
          %495 = vmatpush1.msra.mxu0 %v462
          %496 = vmatprep.subr.mxu0 0.0
          %497 = vmatpush1.msra.mxu0 %v461
          %498 = vmatprep.subr.mxu0 0.0
          %499 = vmatpush1.msra.mxu0 %v460
          %500 = vmatprep.subr.mxu0 0.0
          %501 = vmatpush1.msra.mxu0 %v459
          %502 = vmatprep.subr.mxu0 0.0
          %503 = vmatpush1.msra.mxu0 %v458
          %504 = vmatprep.subr.mxu0 0.0
          %505 = vmatpush1.msra.mxu0 %v457
          %506 = vmatprep.subr.mxu0 0.0
          %507 = vmatpush1.msra.mxu0 %v456
          %508 = vmatprep.subr.mxu0 0.0
          %509 = vmatpush1.msra.mxu0 %v455
          %510 = vmatprep.subr.mxu0 0.0
          %511 = vmatpush2.msra.mxu0 0.0
          %512 = vmatprep.subr.mxu0 0.0
          %513 = vmatpush2.msra.mxu0 0.0
          %514 = vmatprep.subr.mxu0 0.0
          %515 = vmatpush2.msra.mxu0 0.0
          %516 = vmatprep.subr.mxu0 0.0
          %517 = vmatpush2.msra.mxu0 0.0
          %518 = vmatprep.subr.mxu0 0.0
          %519 = vmatpush2.msra.mxu0 0.0
          %520 = vmatprep.subr.mxu0 0.0
          %521 = vmatpush2.msra.mxu0 0.0
          %522 = vmatprep.subr.mxu0 0.0
          %523 = vmatpush2.msra.mxu0 0.0
          %524 = vmatprep.subr.mxu0 0.0
          %525 = vmatpush2.msra.mxu0 0.0
          %526 = vmatprep.subr.mxu0 0.0
          %527 = vmatpush2.msra.mxu0 0.0
          %528 = vmatprep.subr.mxu0 0.0
          %529 = vmatpush2.msra.mxu0 0.0
          %530 = vmatprep.subr.mxu0 0.0
          %531 = vmatpush2.msra.mxu0 0.0
          %532 = vmatprep.subr.mxu0 0.0
          %533 = vmatpush2.msra.mxu0 0.0
          %534 = vmatprep.subr.mxu0 0.0
          %535 = vmatpush2.msra.mxu0 0.0
          %536 = vmatprep.subr.mxu0 0.0
          %537 = vmatpush2.msra.mxu0 0.0
          %538 = vmatprep.subr.mxu0 0.0
          %539 = vmatpush2.msra.mxu0 0.0
          %540 = vmatprep.subr.mxu0 0.0
          %541 = vmatpush2.msra.mxu0 0.0
          %542 = vmatprep.mubr.f32.mxu0 0.0
          %543 = vmatmul.mubr.f32.gmra.mxu0 %v454
          %v544 = vpop.f32.mrf.mxu0
          %v545 = vadd.f32 %v476, %v544
          %v546 = vpop.f32.mrf.mxu0
          %547 = vdwg.mxu0
          %vm548 = vcmask 261120
          %549 = vst.msk [vmem:[%s212] sm:$0xff] %vm548, %v545
        $region48: #{tpu_custom_call.1} parent=35 // pred_fallthru
          _
        %s550 = sand.u32 %s133, 1
        %s551 = scalar_lea.sflag [#allocation7], %s550
        %s552 = sand.u32 %s133, 1
        %s553 = smul.addr %s552, 8
        %s554 = scalar_lea.vmem [#allocation6], %s553
        // Predicated region
        $region49: #{tpu_custom_call.1} parent=35 // pred_check
          %p555 = pneg %p143
        $region50: #{tpu_custom_call.1} parent=35 // pred_check_branch
          %557 = sbr.rel (%p555) target = $region52
        $region51: #{tpu_custom_call.1} parent=35 // pred_region
          %s558 = smul.u32 %s23, %s22
          %s560 = ssub.s32 128, 128
          %561 = vsyncadd %s551, %s560
          %s562 = smul.addr %s558, 128
          %s563 = scalar_lea.hbm %s4, %s562
          %s565 = sshll.u32 %s554, 4
          %s566 = int_to_ptr.vmem [resolvable:$true] %s565
          %568 = dma.vmem_to_hbm [thread:$0]  %s566, 128, %s563, %s551
        $region52: #{tpu_custom_call.1} parent=35 // pred_fallthru
          _
      $region36: #{tpu_custom_call.1} parent=5 // pred_fallthru
        _
      %p569 = scmp.le.s32.totalorder 2, %s13
      // Predicated region
      $region53: #{tpu_custom_call.1} parent=5 // pred_check
        %p570 = pneg %p569
      $region54: #{tpu_custom_call.1} parent=5 // pred_check_branch
        %572 = sbr.rel (%p570) target = $region56
      $region55: #{tpu_custom_call.1} parent=5 // pred_region
        %s573 = ssub.s32 %s13, 2
        // Predicated region
        $region57: #{tpu_custom_call.1} parent=55 // pred_check
          %p574 = pneg %p149
        $region58: #{tpu_custom_call.1} parent=55 // pred_check_branch
          %576 = sbr.rel (%p574) target = $region60
        $region59: #{tpu_custom_call.1} parent=55 // pred_region
          %s577 = sand.u32 %s134, 1
          %s578 = scalar_lea.sflag [#allocation7], %s577
          %s579 = sand.u32 %s134, 1
          %s580 = smul.addr %s579, 8
          %s581 = scalar_lea.vmem [#allocation6], %s580
          %582 = dma.done %s578, 128
        $region60: #{tpu_custom_call.1} parent=55 // pred_fallthru
          _
      $region56: #{tpu_custom_call.1} parent=5 // pred_fallthru
        _
    $region6: #{tpu_custom_call.1} parent=1 // loop_footer
      %s17 = sadd.s32 1, %s13
    $region7: #{tpu_custom_call.1} parent=1 // loop_footer_branch
      %12 = sbr.rel target = $region3
    $region8: #{tpu_custom_call.1} parent=1 // loop_exit
      _
    %583 = vsyncpa [#allocation7], 1
    %s584 = scalar_lea.sflag [#allocation7], 1
    %585 = vsyncpa %s584, 1

</llo_original>
